<compile_context>
chip_gen: v5e
topology: v5e:2x2
jax: 0.10.0
libtpu: 0.0.40
codegen_flags: <defaults>
</compile_context>

<pallas_src>
import functools

import jax
import jax.numpy as jnp
from jax.experimental import pallas as pl
from jax.experimental.pallas import tpu as pltpu


def _round_up(x, m):
    return ((x + m - 1) // m) * m


def _cdiv(a, b):
    return (a + b - 1) // b


def mixing_kernel(a_ref, s_ref, wall_ref, ball_ref, rep_ref, o_ref,
                  *, n_agents, hidden_dim):
    nh = n_agents * hidden_dim
    a = a_ref[...]                                   # (TB, N)  f32
    s = s_ref[...]                                   # (TB, S)  f32

    # Fused hyper-net: one bf16 MXU matmul with f32 accumulation.
    h = jnp.dot(s.astype(jnp.bfloat16), wall_ref[...],
                preferred_element_type=jnp.float32) + ball_ref[...]   # (TB, Dp)

    hw1 = jnp.maximum(h[:, :nh], 0.0)                # abs(relu(x)) == relu(x)
    hb1 = h[:, nh:nh + hidden_dim]                   # (TB, H)
    hw2 = jnp.maximum(h[:, nh + hidden_dim:nh + 2 * hidden_dim], 0.0)  # (TB, H)
    hb2 = h[:, nh + 2 * hidden_dim:nh + 2 * hidden_dim + 1]            # (TB, 1)

    # a_rep[b, n*H + k] = a[b, n]  via a tiny bf16 matmul (R is 0/1 -> exact).
    a_rep = jnp.dot(a.astype(jnp.bfloat16), rep_ref[...],
                    preferred_element_type=jnp.float32)                # (TB, N*H)

    # Per-agent mix: segment-sum over N groups of H lanes with static XLU
    # rolls instead of a 0/1 MXU matmul.  Only lanes [:H] of `acc` are used,
    # so the circular wrap-around in the upper lanes is harmless.
    v = a_rep * hw1                                  # (TB, N*H)
    acc = v
    for n in range(1, n_agents):
        acc = acc + pltpu.roll(v, shift=(n_agents - n) * hidden_dim, axis=1)
    pre = acc[:, :hidden_dim] + hb1                  # (TB, H)

    # clamp(min=0) then log(1 + 2.5 * x)
    hidden = jnp.log(1.0 + 2.5 * jnp.maximum(pre, 0.0))

    # bmm(hidden, w2) + b2  ==  sum_h hidden * w2 + b2
    y = jnp.sum(hidden * hw2, axis=1, keepdims=True) + hb2             # (TB, 1)
    o_ref[...] = y


def prepare_mixing_params(params):
    """One-time constant prep, hoisted off the per-forward hot path."""
    hidden_dim = params["wb1"].shape[1]
    n_agents = params["w1"].shape[1] // hidden_dim
    state_dim = params["w1"].shape[0]

    # Fuse the four hyper-net Linears into one wide matmul; pad to 128 lanes.
    w_all = jnp.concatenate([params["w1"], params["wb1"],
                             params["w2"], params["wb2"]], axis=1)
    b_all = jnp.concatenate([params["b1"], params["bb1"],
                             params["b2"], params["bb2"]], axis=1)
    d_real = w_all.shape[1]                          # N*H + 2H + 1
    d_pad = _round_up(d_real, 128)
    if d_pad != d_real:
        w_all = jnp.pad(w_all, ((0, 0), (0, d_pad - d_real)))
        b_all = jnp.pad(b_all, ((0, 0), (0, d_pad - d_real)))

    # 0/1 agent-replication matrix: (a @ R)[b, n*H + k] = a[b, n].
    rep = jnp.repeat(jnp.eye(n_agents, dtype=jnp.float32), hidden_dim, axis=1)

    return {
        "w_all": w_all.astype(jnp.bfloat16),         # bf16 MXU operand
        "b_all": b_all.astype(jnp.float32),          # added after f32 accumulation
        "rep": rep.astype(jnp.bfloat16),             # 0/1 -> exact in bf16
        "n_agents": n_agents,
        "hidden_dim": hidden_dim,
        "state_dim": state_dim,
        "d_pad": d_pad,
    }


def value_mixing_forward(agent_values, state, prepped, *, block_b=2048):
    agent_values = agent_values.astype(jnp.float32)
    state = state.astype(jnp.float32)
    B, N = agent_values.shape
    S = state.shape[1]
    H = prepped["hidden_dim"]
    d_pad = prepped["d_pad"]
    assert N == prepped["n_agents"] and S == prepped["state_dim"]

    # Batch tile: as big as block_b allows, but capped at ceil(B/2) so the
    # grid has >= 2 steps whenever the batch allows it (v7x megacore sharding
    # of the "parallel" batch axis).  Rows are padded to a multiple of the
    # tile and sliced off after the call; zero rows cannot produce NaN/Inf.
    tb = min(block_b, max(8, _round_up(_cdiv(B, 2), 8)))
    b_pad = _round_up(B, tb)
    if b_pad != B:
        agent_values = jnp.pad(agent_values, ((0, b_pad - B), (0, 0)))
        state = jnp.pad(state, ((0, b_pad - B), (0, 0)))

    grid = (b_pad // tb,)
    kern = functools.partial(mixing_kernel, n_agents=N, hidden_dim=H)

    def batch_spec(feat):
        return pl.BlockSpec((tb, feat), lambda i: (i, 0))

    def const_spec(shape):
        return pl.BlockSpec(shape, lambda i: (0, 0))  # stays resident in VMEM

    out = pl.pallas_call(
        kern,
        out_shape=jax.ShapeDtypeStruct((b_pad, 1), jnp.float32),
        grid=grid,
        in_specs=[
            batch_spec(N),               # agent_values  (tb, N)
            batch_spec(S),               # state         (tb, S)
            const_spec((S, d_pad)),      # fused hyper-net weights (bf16)
            const_spec((1, d_pad)),      # fused hyper-net biases  (f32)
            const_spec((N, N * H)),      # 0/1 agent-replication matrix (bf16)
        ],
        out_specs=batch_spec(1),
        compiler_params=pltpu.CompilerParams(
            dimension_semantics=("parallel",),        # megacore shards batch
            vmem_limit_bytes=32 * 1024 * 1024),       # headroom for tb=2048 on v5e
    )(agent_values, state, prepped["w_all"], prepped["b_all"], prepped["rep"])
    return out[:B, 0]


def init_params(key, n_agents, state_dim, mixing_hidden_dim):
    """Deterministic init mimicking PyTorch Linear default (uniform +/- 1/sqrt(in))."""
    def linear(k, fan_in, fan_out):
        kw, kb = jax.random.split(k)
        lim = 1.0 / jnp.sqrt(jnp.float32(fan_in))
        w = jax.random.uniform(kw, (fan_in, fan_out), jnp.float32, -lim, lim)
        b = jax.random.uniform(kb, (1, fan_out), jnp.float32, -lim, lim)
        return w, b

    k1, k2, k3, k4 = jax.random.split(key, 4)
    w1, b1 = linear(k1, state_dim, mixing_hidden_dim * n_agents)   # hyper_w_1
    w2, b2 = linear(k2, state_dim, mixing_hidden_dim)              # hyper_w_2
    wb1, bb1 = linear(k3, state_dim, mixing_hidden_dim)            # hyper_b_1
    wb2, bb2 = linear(k4, state_dim, 1)                            # hyper_b_2
    return {"w1": w1, "b1": b1, "wb1": wb1, "bb1": bb1,
            "w2": w2, "b2": b2, "wb2": wb2, "bb2": bb2}


def reference_forward(agent_values, state, params):
    """Pure-JAX f32 reference mirroring the PyTorch module, for validation."""
    B, N = agent_values.shape
    H = params["wb1"].shape[1]
    w1 = jnp.abs(jax.nn.relu(state @ params["w1"] + params["b1"])).reshape(B, N, H)
    b1 = (state @ params["wb1"] + params["bb1"]).reshape(B, 1, H)
    pre = jnp.einsum("bn,bnh->bh", agent_values, w1).reshape(B, 1, H) + b1
    hidden = jnp.log(1.0 + 2.5 * jnp.maximum(pre, 0.0))
    w2 = jnp.abs(jax.nn.relu(state @ params["w2"] + params["b2"])).reshape(B, H, 1)
    b2 = (state @ params["wb2"] + params["bb2"]).reshape(B, 1, 1)
    y = jnp.einsum("bqh,bho->bqo", hidden, w2) + b2
    return y.reshape(B)


if __name__ == "__main__":
    n_agents, state_dim, mixing_hidden_dim = 4, 16, 32
    batch = 2

    key = jax.random.PRNGKey(0)
    k_av, k_st, k_p = jax.random.split(key, 3)
    agent_values = jax.random.normal(k_av, (batch, n_agents), jnp.float32)
    state = jax.random.normal(k_st, (batch, state_dim), jnp.float32)
    params = init_params(k_p, n_agents, state_dim, mixing_hidden_dim)
    prepped = prepare_mixing_params(params)          # hoisted constant prep

    y = jax.block_until_ready(value_mixing_forward(agent_values, state, prepped))
    y_ref = reference_forward(agent_values, state, params)
    assert y.shape == (batch,)
    # bf16 MXU operands (f32 accumulation) -> looser tolerance than strict f32.
    assert jnp.allclose(y, y_ref, atol=6e-2, rtol=6e-2), (y, y_ref)

    # Second check: multi-block grid + non-divisible batch (padding + revisit path).
    b2 = 37
    av2 = jax.random.normal(jax.random.PRNGKey(1), (b2, n_agents), jnp.float32)
    st2 = jax.random.normal(jax.random.PRNGKey(2), (b2, state_dim), jnp.float32)
    y2 = jax.block_until_ready(value_mixing_forward(av2, st2, prepped, block_b=16))
    y2_ref = reference_forward(av2, st2, params)
    assert y2.shape == (b2,)
    assert jnp.allclose(y2, y2_ref, atol=6e-2, rtol=6e-2), (y2, y2_ref)

    print("KERNEL_OK")
</pallas_src>

<mosaic_0001>
module attributes {stable_mosaic.version = 11 : i64} {
  func.func @mixing_kernel(%arg0: i32, %arg1: memref<8x4xf32, #tpu.memory_space<vmem>>, %arg2: memref<8x16xf32, #tpu.memory_space<vmem>>, %arg3: memref<16x256xbf16, #tpu.memory_space<vmem>>, %arg4: memref<1x256xf32, #tpu.memory_space<vmem>>, %arg5: memref<4x128xbf16, #tpu.memory_space<vmem>>, %arg6: memref<8x1xf32, #tpu.memory_space<vmem>>) attributes {dimension_semantics = [#tpu.dimension_semantics<parallel>], iteration_bounds = array<i64: 1>, scalar_prefetch = 0 : i64, scratch_operands = 0 : i64, tpu.core_type = #tpu.core_type<tc>, window_params = [{transform_indices = @transform_0, window_bounds = array<i64: 8, 4>}, {transform_indices = @transform_1, window_bounds = array<i64: 8, 16>}, {pipeline_mode = #tpu.pipeline_mode<synchronous>, transform_indices = @transform_2, window_bounds = array<i64: 16, 256>}, {pipeline_mode = #tpu.pipeline_mode<synchronous>, transform_indices = @transform_3, window_bounds = array<i64: 1, 256>}, {pipeline_mode = #tpu.pipeline_mode<synchronous>, transform_indices = @transform_4, window_bounds = array<i64: 4, 128>}, {transform_indices = @transform_5, window_bounds = array<i64: 8, 1>}]} {
    %c0 = arith.constant 0 : index
    %c0_0 = arith.constant 0 : index
    %0 = vector.load %arg1[%c0, %c0_0] : memref<8x4xf32, #tpu.memory_space<vmem>>, vector<8x4xf32>
    %c0_1 = arith.constant 0 : index
    %c0_2 = arith.constant 0 : index
    %1 = vector.load %arg2[%c0_1, %c0_2] : memref<8x16xf32, #tpu.memory_space<vmem>>, vector<8x16xf32>
    %2 = arith.truncf %1 : vector<8x16xf32> to vector<8x16xbf16>
    %c0_3 = arith.constant 0 : index
    %c0_4 = arith.constant 0 : index
    %3 = vector.load %arg3[%c0_3, %c0_4] : memref<16x256xbf16, #tpu.memory_space<vmem>>, vector<16x256xbf16>
    %cst = arith.constant dense<0.000000e+00> : vector<8x256xf32>
    %4 = tpu.matmul %2, %3, %cst {dimension_numbers = #tpu.dot_dimension_numbers<[1], [0], [0], [1], [0, 0, 1, 1], [], []>} : vector<8x16xbf16>, vector<16x256xbf16>, vector<8x256xf32> -> vector<8x256xf32>
    %c0_5 = arith.constant 0 : index
    %c0_6 = arith.constant 0 : index
    %5 = vector.load %arg4[%c0_5, %c0_6] : memref<1x256xf32, #tpu.memory_space<vmem>>, vector<1x256xf32>
    %6 = vector.broadcast %5 : vector<1x256xf32> to vector<8x256xf32>
    %7 = arith.addf %4, %6 : vector<8x256xf32>
    %8 = vector.extract_strided_slice %7 {offsets = [0, 0], sizes = [8, 128], strides = [1, 1]} : vector<8x256xf32> to vector<8x128xf32>
    %cst_7 = arith.constant 0.000000e+00 : f32
    %9 = vector.broadcast %cst_7 : f32 to vector<8x128xf32>
    %10 = arith.maximumf %8, %9 : vector<8x128xf32>
    %11 = vector.extract_strided_slice %7 {offsets = [0, 128], sizes = [8, 32], strides = [1, 1]} : vector<8x256xf32> to vector<8x32xf32>
    %12 = vector.extract_strided_slice %7 {offsets = [0, 160], sizes = [8, 32], strides = [1, 1]} : vector<8x256xf32> to vector<8x32xf32>
    %cst_8 = arith.constant 0.000000e+00 : f32
    %13 = vector.broadcast %cst_8 : f32 to vector<8x32xf32>
    %14 = arith.maximumf %12, %13 : vector<8x32xf32>
    %15 = vector.extract_strided_slice %7 {offsets = [0, 192], sizes = [8, 1], strides = [1, 1]} : vector<8x256xf32> to vector<8x1xf32>
    %16 = arith.truncf %0 : vector<8x4xf32> to vector<8x4xbf16>
    %c0_9 = arith.constant 0 : index
    %c0_10 = arith.constant 0 : index
    %17 = vector.load %arg5[%c0_9, %c0_10] : memref<4x128xbf16, #tpu.memory_space<vmem>>, vector<4x128xbf16>
    %cst_11 = arith.constant dense<0.000000e+00> : vector<8x128xf32>
    %18 = tpu.matmul %16, %17, %cst_11 {dimension_numbers = #tpu.dot_dimension_numbers<[1], [0], [0], [1], [0, 0, 1, 1], [], []>} : vector<8x4xbf16>, vector<4x128xbf16>, vector<8x128xf32> -> vector<8x128xf32>
    %19 = arith.mulf %18, %10 : vector<8x128xf32>
    %c96_i32 = arith.constant 96 : i32
    %20 = tpu.dynamic_rotate %19 by %c96_i32 dim 1 : vector<8x128xf32>, i32 -> vector<8x128xf32>
    %21 = arith.addf %19, %20 : vector<8x128xf32>
    %c64_i32 = arith.constant 64 : i32
    %22 = tpu.dynamic_rotate %19 by %c64_i32 dim 1 : vector<8x128xf32>, i32 -> vector<8x128xf32>
    %23 = arith.addf %21, %22 : vector<8x128xf32>
    %c32_i32 = arith.constant 32 : i32
    %24 = tpu.dynamic_rotate %19 by %c32_i32 dim 1 : vector<8x128xf32>, i32 -> vector<8x128xf32>
    %25 = arith.addf %23, %24 : vector<8x128xf32>
    %26 = vector.extract_strided_slice %25 {offsets = [0, 0], sizes = [8, 32], strides = [1, 1]} : vector<8x128xf32> to vector<8x32xf32>
    %27 = arith.addf %26, %11 : vector<8x32xf32>
    %cst_12 = arith.constant 0.000000e+00 : f32
    %28 = vector.broadcast %cst_12 : f32 to vector<8x32xf32>
    %29 = arith.maximumf %27, %28 : vector<8x32xf32>
    %cst_13 = arith.constant 2.500000e+00 : f32
    %30 = vector.broadcast %cst_13 : f32 to vector<8x32xf32>
    %31 = arith.mulf %30, %29 : vector<8x32xf32>
    %cst_14 = arith.constant 1.000000e+00 : f32
    %32 = vector.broadcast %cst_14 : f32 to vector<8x32xf32>
    %33 = arith.addf %32, %31 : vector<8x32xf32>
    %34 = math.log %33 : vector<8x32xf32>
    %35 = arith.mulf %34, %14 : vector<8x32xf32>
    %cst_15 = arith.constant dense<0.000000e+00> : vector<8xf32>
    %36 = vector.multi_reduction <add>, %35, %cst_15 [1] : vector<8x32xf32> to vector<8xf32>
    %37 = vector.shape_cast %36 : vector<8xf32> to vector<8x1xf32>
    %38 = arith.addf %37, %15 : vector<8x1xf32>
    %c0_16 = arith.constant 0 : index
    %c0_17 = arith.constant 0 : index
    %39 = vector.load %arg6[%c0_16, %c0_17] : memref<8x1xf32, #tpu.memory_space<vmem>>, vector<8x1xf32>
    tpu.vector_store %arg6[%c0_16, %c0_17], %38 {strides = array<i32>} : memref<8x1xf32, #tpu.memory_space<vmem>>, vector<8x1xf32>,
    return
  }
  func.func @transform_0(%arg0: i32) -> (i32, i32) {
    %c0_i32 = arith.constant 0 : i32
    %c0_i32_0 = arith.constant 0 : i32
    return %arg0, %c0_i32 : i32, i32
  }
  func.func @transform_1(%arg0: i32) -> (i32, i32) {
    %c0_i32 = arith.constant 0 : i32
    %c0_i32_0 = arith.constant 0 : i32
    return %arg0, %c0_i32 : i32, i32
  }
  func.func @transform_2(%arg0: i32) -> (i32, i32) {
    %c0_i32 = arith.constant 0 : i32
    %c0_i32_0 = arith.constant 0 : i32
    %c0_i32_1 = arith.constant 0 : i32
    return %c0_i32, %c0_i32_0 : i32, i32
  }
  func.func @transform_3(%arg0: i32) -> (i32, i32) {
    %c0_i32 = arith.constant 0 : i32
    %c0_i32_0 = arith.constant 0 : i32
    %c0_i32_1 = arith.constant 0 : i32
    return %c0_i32, %c0_i32_0 : i32, i32
  }
  func.func @transform_4(%arg0: i32) -> (i32, i32) {
    %c0_i32 = arith.constant 0 : i32
    %c0_i32_0 = arith.constant 0 : i32
    %c0_i32_1 = arith.constant 0 : i32
    return %c0_i32, %c0_i32_0 : i32, i32
  }
  func.func @transform_5(%arg0: i32) -> (i32, i32) {
    %c0_i32 = arith.constant 0 : i32
    %c0_i32_0 = arith.constant 0 : i32
    return %arg0, %c0_i32 : i32, i32
  }
}

</mosaic_0001>

<llo_original>
// kernel: tpu_custom_call.1
$region0: #{tpu_custom_call.1}
  #allocation0 [shape = 'u32[]', space=smem, size = 0x4, offset = 0x4, fixed_abs, tag = 'smem constant byte address 0x4 - core index']
  #allocation1 [shape = 'u32[72,128]{1,0:T(1,128)}', space=vmem, size = 0x9000, scoped, tag = 'internal scratch']
  %s0 = inlined_call_operand.vmem [shape: f32[8,4], index: 0, kind: input, shape index: {}]
  %s1 = inlined_call_operand.vmem [shape: f32[8,16], index: 1, kind: input, shape index: {}]
  %s2 = inlined_call_operand.hbm [shape: bf16[16,256], index: 2, kind: input, shape index: {}]
  %s3 = inlined_call_operand.vmem [shape: f32[1,256], index: 3, kind: input, shape index: {}]
  %s4 = inlined_call_operand.vmem [shape: bf16[4,128], index: 4, kind: input, shape index: {}]
  %s5 = inlined_call_operand.vmem [shape: f32[8,1], index: 5, kind: output, shape index: {}]
  %s6 = sld [smem:[#allocation0]]
  $region34: #{tpu_custom_call.1} parent=0
    _
  %s8 = ssub.s32 1, %s6
  %s9 = scalar_select 0, %s8, %s6
  $region1: #{tpu_custom_call.1} parent=0
    #allocation2 [shape = 'u8[8192]{0}', space=vmem, size = 0x2000, scoped, tag = 'input window, operand 2, single buffered']
    #allocation3 [shape = 's32[1]{0}', space=sflag, size = 0x4, scoped, tag = 'scoped memory for tpu_custom_call.1']
    %10 = vsyncpa [#allocation3], 0
    // Predicated region
    $region2: #{tpu_custom_call.1} parent=1 // pred_check
      _
    $region3: #{tpu_custom_call.1} parent=1 // pred_check_branch
      %12 = sbr.rel (0) target = $region5
    $region4: #{tpu_custom_call.1} parent=1 // pred_region
      _
    $region5: #{tpu_custom_call.1} parent=1 // pred_fallthru
      _
    // Predicated region
    $region6: #{tpu_custom_call.1} parent=1 // pred_check
      _
    $region7: #{tpu_custom_call.1} parent=1 // pred_check_branch
      %14 = sbr.rel (0) target = $region9
    $region8: #{tpu_custom_call.1} parent=1 // pred_region
      _
    $region9: #{tpu_custom_call.1} parent=1 // pred_fallthru
      _
    // Predicated region
    $region10: #{tpu_custom_call.1} parent=1 // pred_check
      _
    $region11: #{tpu_custom_call.1} parent=1 // pred_check_branch
      %16 = sbr.rel (0) target = $region13
    $region12: #{tpu_custom_call.1} parent=1 // pred_region
      %18 = vsyncadd [#allocation3], 0
      %s19 = sshll.u32 %s2, 4
      %s20 = int_to_ptr.hbm [resolvable:$true] %s19
      %s21 = sshll.u32 [#allocation2], 4
      %s22 = int_to_ptr.vmem [resolvable:$true] %s21
      %27 = dma.hbm_to_vmem [thread:$0]  %s20, 256, %s22, [#allocation3], 128, 128, 8
    $region13: #{tpu_custom_call.1} parent=1 // pred_fallthru
      _
    // Predicated region
    $region14: #{tpu_custom_call.1} parent=1 // pred_check
      _
    $region15: #{tpu_custom_call.1} parent=1 // pred_check_branch
      %29 = sbr.rel (0) target = $region17
    $region16: #{tpu_custom_call.1} parent=1 // pred_region
      _
    $region17: #{tpu_custom_call.1} parent=1 // pred_fallthru
      _
    // Predicated region
    $region18: #{tpu_custom_call.1} parent=1 // pred_check
      _
    $region19: #{tpu_custom_call.1} parent=1 // pred_check_branch
      %31 = sbr.rel (0) target = $region21
    $region20: #{tpu_custom_call.1} parent=1 // pred_region
      _
    $region21: #{tpu_custom_call.1} parent=1 // pred_fallthru
      _
    // Predicated region
    $region22: #{tpu_custom_call.1} parent=1 // pred_check
      _
    $region23: #{tpu_custom_call.1} parent=1 // pred_check_branch
      %33 = sbr.rel (0) target = $region25
    $region24: #{tpu_custom_call.1} parent=1 // pred_region
      %35 = dma.done [#allocation3], 256
    $region25: #{tpu_custom_call.1} parent=1 // pred_fallthru
      _
    %v37 = vld [vmem:[%s0] sm:$0xff]
    %v38 = vld [vmem:[%s1] sm:$0xff]
    %v39 = vpack.c.bf16 %v38, %v38
    %v40 = vld [vmem:[#allocation2] sm:$0xff]
    %v41 = vld [vmem:[#allocation2 + $0x8] sm:$0xff]
    %v42 = vld [vmem:[%s3] sm:$0x3]
    %v44 = vperm.slane %v42, 0
    %v45 = vperm.slane %v42, 1
    %v50 = vunpack.c.l.b16 %v40
    %v51 = vunpack.c.h.b16 %v40
    %v52 = vunpack.c.l.b16 %v41
    %v53 = vunpack.c.h.b16 %v41
    %v54 = vpack.c.b16 %v52, %v50
    %v55 = vpack.c.b16 %v53, %v51
    %vm58 = vcmask 130048
    %v60 = vsel %vm58, %v39, 0
    %62 = vmatpush.bf16.msra.mxu0 0
    %63 = vmatpush.bf16.msra.mxu0 0
    %64 = vmatpush.bf16.msra.mxu0 0
    %65 = vmatpush.bf16.msra.mxu0 0
    %66 = vmatpush.bf16.msra.mxu0 0
    %67 = vmatpush.bf16.msra.mxu0 0
    %68 = vmatpush.bf16.msra.mxu0 0
    %69 = vmatpush.bf16.msra.mxu0 %v54
    %70 = vmatmul.bf16.gmra.mxu0 %v60
    %v71 = vpop.f32.mrf.mxu0
    %v72 = vadd.f32 %v44, %v71
    %v73 = vpop.f32.mrf.mxu0
    %74 = vdwg.mxu0
    %75 = vmatpush.bf16.msra.mxu0 0
    %76 = vmatpush.bf16.msra.mxu0 0
    %77 = vmatpush.bf16.msra.mxu0 0
    %78 = vmatpush.bf16.msra.mxu0 0
    %79 = vmatpush.bf16.msra.mxu0 0
    %80 = vmatpush.bf16.msra.mxu0 0
    %81 = vmatpush.bf16.msra.mxu0 0
    %82 = vmatpush.bf16.msra.mxu0 %v55
    %83 = vmatmul.bf16.gmra.mxu0 %v60
    %v84 = vpop.f32.mrf.mxu0
    %v85 = vadd.f32 %v45, %v84
    %v86 = vpop.f32.mrf.mxu0
    %87 = vdwg.mxu0
    %v88 = vmax.f32 %v72, 0.0
    %v89 = vmax.f32 %v85, 0.0
    %v90 = vpack.c.bf16 %v37, %v37
    %v91 = vld [vmem:[%s4] sm:$0x3]
    %vm92 = vcmask 31744
    %v94 = vsel %vm92, %v90, 0
    %vm96 = vcmask 1041408
    %v98 = vsel %vm96, %v91, 0
    %100 = vmatpush.bf16.msra.mxu0 0
    %101 = vmatpush.bf16.msra.mxu0 0
    %102 = vmatpush.bf16.msra.mxu0 0
    %103 = vmatpush.bf16.msra.mxu0 0
    %104 = vmatpush.bf16.msra.mxu0 0
    %105 = vmatpush.bf16.msra.mxu0 0
    %106 = vmatpush.bf16.msra.mxu0 0
    %107 = vmatpush.bf16.msra.mxu0 %v98
    %108 = vmatmul.bf16.gmra.mxu0 %v94
    %v109 = vpop.f32.mrf.mxu0
    %v110 = vadd.f32 0.0, %v109
    %v111 = vpop.f32.mrf.mxu0
    %112 = vdwg.mxu0
    %v113 = vmul.f32 %v110, %v88
    %114 = vrot.lane.b32.xlu0 %v113, 96
    %v115 = vpop.permute.xlu0 %114
    %v116 = vadd.f32 %v113, %v115
    %117 = vrot.lane.b32.xlu0 %v113, 64
    %v118 = vpop.permute.xlu0 %117
    %v119 = vadd.f32 %v116, %v118
    %120 = vrot.lane.b32.xlu0 %v113, 32
    %v121 = vpop.permute.xlu0 %120
    %v122 = vadd.f32 %v119, %v121
    %v123 = vadd.f32 %v122, %v85
    %v124 = vmax.f32 %v123, 0.0
    %v125 = vmul.f32 %v124, 2.5
    %v126 = vadd.f32 %v125, 1.0
    %v127 = vlog2.pop %v126
    %v128 = vmul.f32 %v127, 0.6931472
    %130 = vrot.lane.b32.xlu0 %v89, 96
    %v131 = vpop.permute.xlu0 %130
    %v133 = vmul.f32 %v128, %v131
    %vm134 = vcmask 261120
    %v135 = vsel %vm134, %v133, 0.0
    %136 = vadd.xlane.f32.xlu0 %v135
    %v137 = vpop.xlane.xlu0 %136
    %v138 = vadd.f32 %v137, %v85
    %140 = vrot.lane.b32.xlu0 %v138, 64
    %v141 = vpop.permute.xlu0 %140
    %vm143 = vcmask 7168
    %144 = vst.msk [vmem:[%s5] sm:$0xff] %vm143, %v141
    // Predicated region
    $region26: #{tpu_custom_call.1} parent=1 // pred_check
      _
    $region27: #{tpu_custom_call.1} parent=1 // pred_check_branch
      %146 = sbr.rel (0) target = $region29
    $region28: #{tpu_custom_call.1} parent=1 // pred_region
      _
    $region29: #{tpu_custom_call.1} parent=1 // pred_fallthru
      _
    // Predicated region
    $region30: #{tpu_custom_call.1} parent=1 // pred_check
      _
    $region31: #{tpu_custom_call.1} parent=1 // pred_check_branch
      %148 = sbr.rel (0) target = $region33
    $region32: #{tpu_custom_call.1} parent=1 // pred_region
      _
    $region33: #{tpu_custom_call.1} parent=1 // pred_fallthru
      _
    %149 = vsyncpa [#allocation3], 1

</llo_original>
